<compile_context>
chip_gen: v7x
topology: tpu7x:2x2x1
jax: 0.10.0
libtpu: 0.0.40
codegen_flags: <defaults>
</compile_context>

<pallas_src>
import jax
import jax.numpy as jnp
from jax.experimental import pallas as pl
from jax.experimental.pallas import tpu as pltpu
import numpy as np


def lstm_nli_kernel(x_ref, wih_ref, whh_ref, b_ref, wout_ref, bout_ref,
                    out_ref):
    """Whole-sequence LSTM + final linear + softmax, all resident in VMEM.

    x_ref   : (T, E)     sentence (one-hot POS rows, but any floats work)
    wih_ref : (E, 4*H)   W_ih^T, gate g in lanes [g*H,(g+1)*H); g-block x2
    whh_ref : (H, 4*H)   W_hh^T, packed/scaled the same way
    b_ref   : (1, 4*H)   b_ih + b_hh, packed/scaled the same way
    wout_ref: (H, LP)    hidden2tag.weight^T zero-padded to LP (=128) lanes
    bout_ref: (1, LP)    hidden2tag.bias, padded lanes = -1e30
    out_ref : (1, LP)    softmax probabilities (padded lanes exactly 0)
    """
    T = x_ref.shape[0]
    H = whh_ref.shape[0]

    # --- Hoisted input projection: one MXU matmul for all timesteps, bias
    #     folded in.  Off the recurrent dependency chain.
    xw = jnp.dot(x_ref[...], wih_ref[...],
                 preferred_element_type=jnp.float32) + b_ref[...]   # (T, 4H)

    whh = whh_ref[...]                                              # (H, 4H)

    # --- Recurrence with h/c carried as register values.  T is static and
    #     small, so a Python loop fully unrolls it.
    h = jnp.zeros((1, H), jnp.float32)
    c = jnp.zeros((1, H), jnp.float32)
    for t in range(T):
        gates = xw[t:t + 1, :] + jnp.dot(h, whh,
                                         preferred_element_type=jnp.float32)
        # ONE sigmoid over the whole 128-lane packed gate vreg.  The g-gate
        # preactivation was pre-scaled by 2, so tanh(x) = 2*sigmoid(2x) - 1
        # is recovered with a single FMA (no separate tanh on the chain).
        sg = jax.nn.sigmoid(gates)
        i_g = sg[:, 0 * H:1 * H]
        f_g = sg[:, 1 * H:2 * H]
        g_g = 2.0 * sg[:, 2 * H:3 * H] - 1.0
        o_g = sg[:, 3 * H:4 * H]
        c = f_g * c + i_g * g_g
        h = o_g * jnp.tanh(c)

    # --- Final linear + softmax over the lane-dense padded output block.
    #     Padded bias lanes are -1e30 -> exp underflows to exactly 0, so the
    #     softmax over all LP lanes equals the softmax over the L real lanes.
    logits = (jnp.dot(h, wout_ref[...], preferred_element_type=jnp.float32)
              + bout_ref[...])                                      # (1, LP)
    m = jnp.max(logits, axis=1, keepdims=True)
    e = jnp.exp(logits - m)
    denom = jnp.sum(e, axis=1, keepdims=True)
    out_ref[...] = e * pl.reciprocal(denom, approx=True)


def lstm_nli_forward(x, w_ih, w_hh, b_ih, b_hh, w_out, b_out):
    """x: (T, E) float32 sentence. Returns softmax probs (1, label_dim)."""
    T, E = x.shape
    H4 = w_ih.shape[0]
    H = H4 // 4
    L = w_out.shape[0]
    LP = ((L + 127) // 128) * 128          # lane-dense output block (>=128)

    # Gate packing is just the transpose (gate g at lanes [g*H,(g+1)*H)).
    # Scale the g-gate (index 2) block by 2 so the kernel recovers tanh with
    # a single packed sigmoid: tanh(x) = 2*sigmoid(2x) - 1.
    gscale = jnp.concatenate([jnp.ones((2 * H,), jnp.float32),
                              2.0 * jnp.ones((H,), jnp.float32),
                              jnp.ones((H,), jnp.float32)])          # (4H,)
    wih_p = jnp.asarray(w_ih, jnp.float32).T * gscale[None, :]       # (E, 4H)
    whh_p = jnp.asarray(w_hh, jnp.float32).T * gscale[None, :]       # (H, 4H)
    b_p = ((jnp.asarray(b_ih, jnp.float32) + jnp.asarray(b_hh, jnp.float32))
           * gscale).reshape(1, 4 * H)                               # (1, 4H)

    # Output head padded to LP lanes: zero weight columns, -1e30 bias in the
    # padded lanes so their softmax probability underflows to exactly 0.
    wout_t = jnp.pad(jnp.asarray(w_out, jnp.float32).T,
                     ((0, 0), (0, LP - L)))                          # (H, LP)
    bout = jnp.pad(jnp.asarray(b_out, jnp.float32).reshape(1, L),
                   ((0, 0), (0, LP - L)), constant_values=-1e30)     # (1, LP)

    vmem = pl.BlockSpec(memory_space=pltpu.MemorySpace.VMEM)
    out = pl.pallas_call(
        lstm_nli_kernel,
        out_shape=jax.ShapeDtypeStruct((1, LP), jnp.float32),
        in_specs=[vmem] * 6,
        out_specs=vmem,
    )(x.astype(jnp.float32), wih_p, whh_p, b_p, wout_t, bout)
    return out[:, :L]


def _reference_forward(x, w_ih, w_hh, b_ih, b_hh, w_out, b_out):
    """Pure-JAX reference matching torch.nn.LSTM semantics."""
    H = w_hh.shape[1]
    h = jnp.zeros((1, H), jnp.float32)
    c = jnp.zeros((1, H), jnp.float32)
    for t in range(x.shape[0]):
        g = x[t:t + 1] @ w_ih.T + h @ w_hh.T + b_ih + b_hh
        i = jax.nn.sigmoid(g[:, 0:H])
        f = jax.nn.sigmoid(g[:, H:2 * H])
        gg = jnp.tanh(g[:, 2 * H:3 * H])
        o = jax.nn.sigmoid(g[:, 3 * H:4 * H])
        c = f * c + i * gg
        h = o * jnp.tanh(c)
    logits = h @ w_out.T + b_out
    return jax.nn.softmax(logits, axis=1)


if __name__ == "__main__":
    # Small shapes consistent with the module: embedding_dim = #POS tags,
    # seq_len POS tokens, one sentence (batch=1 is hard-wired in forward()).
    embedding_dim = 16   # |pos_to_ix|
    hidden_dim = 32
    label_dim = 8
    seq_len = 8

    key = jax.random.PRNGKey(0)
    k_pos, k1, k2, k3, k4, k5, k6 = jax.random.split(key, 7)

    # prepare_sequence produces one-hot POS rows -> build the same here.
    pos_ids = jax.random.randint(k_pos, (seq_len,), 0, embedding_dim)
    sentence = jax.nn.one_hot(pos_ids, embedding_dim, dtype=jnp.float32)

    # Deterministic parameter init (PyTorch LSTM/Linear-style uniform).
    bound = 1.0 / np.sqrt(hidden_dim)
    w_ih = jax.random.uniform(k1, (4 * hidden_dim, embedding_dim),
                              jnp.float32, -bound, bound)
    w_hh = jax.random.uniform(k2, (4 * hidden_dim, hidden_dim),
                              jnp.float32, -bound, bound)
    b_ih = jax.random.uniform(k3, (4 * hidden_dim,), jnp.float32, -bound, bound)
    b_hh = jax.random.uniform(k4, (4 * hidden_dim,), jnp.float32, -bound, bound)
    w_out = jax.random.uniform(k5, (label_dim, hidden_dim),
                               jnp.float32, -bound, bound)
    b_out = jax.random.uniform(k6, (label_dim,), jnp.float32, -bound, bound)

    pred = lstm_nli_forward(sentence, w_ih, w_hh, b_ih, b_hh, w_out, b_out)
    pred = jax.block_until_ready(pred)

    ref = _reference_forward(sentence, w_ih, w_hh, b_ih, b_hh, w_out, b_out)
    # Tolerance accounts for the EUP approximate reciprocal in the softmax
    # tail (and 2*sigmoid(2x)-1 vs tanh rounding); any structural bug would
    # move probabilities far beyond this.
    np.testing.assert_allclose(np.asarray(pred), np.asarray(ref),
                               rtol=2e-3, atol=2e-3)
    assert pred.shape == (1, label_dim)

    print("KERNEL_OK")
</pallas_src>

<mosaic_0001>
module attributes {stable_mosaic.version = 11 : i64} {
  func.func @lstm_nli_kernel(%arg0: memref<8x16xf32, #tpu.memory_space<vmem>>, %arg1: memref<16x128xf32, #tpu.memory_space<vmem>>, %arg2: memref<32x128xf32, #tpu.memory_space<vmem>>, %arg3: memref<1x128xf32, #tpu.memory_space<vmem>>, %arg4: memref<32x128xf32, #tpu.memory_space<vmem>>, %arg5: memref<1x128xf32, #tpu.memory_space<vmem>>, %arg6: memref<1x128xf32, #tpu.memory_space<vmem>>) attributes {dimension_semantics = [], scalar_prefetch = 0 : i64, scratch_operands = 0 : i64, tpu.core_type = #tpu.core_type<tc>} {
    %c0 = arith.constant 0 : index
    %c0_0 = arith.constant 0 : index
    %0 = vector.load %arg0[%c0, %c0_0] : memref<8x16xf32, #tpu.memory_space<vmem>>, vector<8x16xf32>
    %c0_1 = arith.constant 0 : index
    %c0_2 = arith.constant 0 : index
    %1 = vector.load %arg1[%c0_1, %c0_2] : memref<16x128xf32, #tpu.memory_space<vmem>>, vector<16x128xf32>
    %cst = arith.constant dense<0.000000e+00> : vector<8x128xf32>
    %2 = tpu.matmul %0, %1, %cst {dimension_numbers = #tpu.dot_dimension_numbers<[1], [0], [0], [1], [0, 0, 1, 1], [], []>} : vector<8x16xf32>, vector<16x128xf32>, vector<8x128xf32> -> vector<8x128xf32>
    %c0_3 = arith.constant 0 : index
    %c0_4 = arith.constant 0 : index
    %3 = vector.load %arg3[%c0_3, %c0_4] : memref<1x128xf32, #tpu.memory_space<vmem>>, vector<1x128xf32>
    %4 = vector.broadcast %3 : vector<1x128xf32> to vector<8x128xf32>
    %5 = arith.addf %2, %4 : vector<8x128xf32>
    %c0_5 = arith.constant 0 : index
    %c0_6 = arith.constant 0 : index
    %6 = vector.load %arg2[%c0_5, %c0_6] : memref<32x128xf32, #tpu.memory_space<vmem>>, vector<32x128xf32>
    %cst_7 = arith.constant 0.000000e+00 : f32
    %7 = vector.broadcast %cst_7 : f32 to vector<1x32xf32>
    %cst_8 = arith.constant 0.000000e+00 : f32
    %8 = vector.broadcast %cst_8 : f32 to vector<1x32xf32>
    %9 = vector.extract_strided_slice %5 {offsets = [0, 0], sizes = [1, 128], strides = [1, 1]} : vector<8x128xf32> to vector<1x128xf32>
    %cst_9 = arith.constant dense<0.000000e+00> : vector<1x128xf32>
    %10 = tpu.matmul %7, %6, %cst_9 {dimension_numbers = #tpu.dot_dimension_numbers<[1], [0], [0], [1], [0, 0, 1, 1], [], []>} : vector<1x32xf32>, vector<32x128xf32>, vector<1x128xf32> -> vector<1x128xf32>
    %11 = arith.addf %9, %10 : vector<1x128xf32>
    %12 = arith.negf %11 : vector<1x128xf32>
    %13 = math.exp %12 : vector<1x128xf32>
    %cst_10 = arith.constant 1.000000e+00 : f32
    %14 = vector.broadcast %cst_10 : f32 to vector<1x128xf32>
    %15 = arith.addf %14, %13 : vector<1x128xf32>
    %16 = arith.divf %14, %15 : vector<1x128xf32>
    %17 = vector.extract_strided_slice %16 {offsets = [0, 0], sizes = [1, 32], strides = [1, 1]} : vector<1x128xf32> to vector<1x32xf32>
    %18 = vector.extract_strided_slice %16 {offsets = [0, 32], sizes = [1, 32], strides = [1, 1]} : vector<1x128xf32> to vector<1x32xf32>
    %19 = vector.extract_strided_slice %16 {offsets = [0, 64], sizes = [1, 32], strides = [1, 1]} : vector<1x128xf32> to vector<1x32xf32>
    %cst_11 = arith.constant 2.000000e+00 : f32
    %20 = vector.broadcast %cst_11 : f32 to vector<1x32xf32>
    %21 = arith.mulf %20, %19 : vector<1x32xf32>
    %cst_12 = arith.constant 1.000000e+00 : f32
    %22 = vector.broadcast %cst_12 : f32 to vector<1x32xf32>
    %23 = arith.subf %21, %22 : vector<1x32xf32>
    %24 = vector.extract_strided_slice %16 {offsets = [0, 96], sizes = [1, 32], strides = [1, 1]} : vector<1x128xf32> to vector<1x32xf32>
    %25 = arith.mulf %18, %8 : vector<1x32xf32>
    %26 = arith.mulf %17, %23 : vector<1x32xf32>
    %27 = arith.addf %25, %26 : vector<1x32xf32>
    %28 = math.tanh %27 : vector<1x32xf32>
    %29 = arith.mulf %24, %28 : vector<1x32xf32>
    %30 = vector.extract_strided_slice %5 {offsets = [1, 0], sizes = [1, 128], strides = [1, 1]} : vector<8x128xf32> to vector<1x128xf32>
    %cst_13 = arith.constant dense<0.000000e+00> : vector<1x128xf32>
    %31 = tpu.matmul %29, %6, %cst_13 {dimension_numbers = #tpu.dot_dimension_numbers<[1], [0], [0], [1], [0, 0, 1, 1], [], []>} : vector<1x32xf32>, vector<32x128xf32>, vector<1x128xf32> -> vector<1x128xf32>
    %32 = arith.addf %30, %31 : vector<1x128xf32>
    %33 = arith.negf %32 : vector<1x128xf32>
    %34 = math.exp %33 : vector<1x128xf32>
    %cst_14 = arith.constant 1.000000e+00 : f32
    %35 = vector.broadcast %cst_14 : f32 to vector<1x128xf32>
    %36 = arith.addf %35, %34 : vector<1x128xf32>
    %37 = arith.divf %35, %36 : vector<1x128xf32>
    %38 = vector.extract_strided_slice %37 {offsets = [0, 0], sizes = [1, 32], strides = [1, 1]} : vector<1x128xf32> to vector<1x32xf32>
    %39 = vector.extract_strided_slice %37 {offsets = [0, 32], sizes = [1, 32], strides = [1, 1]} : vector<1x128xf32> to vector<1x32xf32>
    %40 = vector.extract_strided_slice %37 {offsets = [0, 64], sizes = [1, 32], strides = [1, 1]} : vector<1x128xf32> to vector<1x32xf32>
    %cst_15 = arith.constant 2.000000e+00 : f32
    %41 = vector.broadcast %cst_15 : f32 to vector<1x32xf32>
    %42 = arith.mulf %41, %40 : vector<1x32xf32>
    %cst_16 = arith.constant 1.000000e+00 : f32
    %43 = vector.broadcast %cst_16 : f32 to vector<1x32xf32>
    %44 = arith.subf %42, %43 : vector<1x32xf32>
    %45 = vector.extract_strided_slice %37 {offsets = [0, 96], sizes = [1, 32], strides = [1, 1]} : vector<1x128xf32> to vector<1x32xf32>
    %46 = arith.mulf %39, %27 : vector<1x32xf32>
    %47 = arith.mulf %38, %44 : vector<1x32xf32>
    %48 = arith.addf %46, %47 : vector<1x32xf32>
    %49 = math.tanh %48 : vector<1x32xf32>
    %50 = arith.mulf %45, %49 : vector<1x32xf32>
    %51 = vector.extract_strided_slice %5 {offsets = [2, 0], sizes = [1, 128], strides = [1, 1]} : vector<8x128xf32> to vector<1x128xf32>
    %cst_17 = arith.constant dense<0.000000e+00> : vector<1x128xf32>
    %52 = tpu.matmul %50, %6, %cst_17 {dimension_numbers = #tpu.dot_dimension_numbers<[1], [0], [0], [1], [0, 0, 1, 1], [], []>} : vector<1x32xf32>, vector<32x128xf32>, vector<1x128xf32> -> vector<1x128xf32>
    %53 = arith.addf %51, %52 : vector<1x128xf32>
    %54 = arith.negf %53 : vector<1x128xf32>
    %55 = math.exp %54 : vector<1x128xf32>
    %cst_18 = arith.constant 1.000000e+00 : f32
    %56 = vector.broadcast %cst_18 : f32 to vector<1x128xf32>
    %57 = arith.addf %56, %55 : vector<1x128xf32>
    %58 = arith.divf %56, %57 : vector<1x128xf32>
    %59 = vector.extract_strided_slice %58 {offsets = [0, 0], sizes = [1, 32], strides = [1, 1]} : vector<1x128xf32> to vector<1x32xf32>
    %60 = vector.extract_strided_slice %58 {offsets = [0, 32], sizes = [1, 32], strides = [1, 1]} : vector<1x128xf32> to vector<1x32xf32>
    %61 = vector.extract_strided_slice %58 {offsets = [0, 64], sizes = [1, 32], strides = [1, 1]} : vector<1x128xf32> to vector<1x32xf32>
    %cst_19 = arith.constant 2.000000e+00 : f32
    %62 = vector.broadcast %cst_19 : f32 to vector<1x32xf32>
    %63 = arith.mulf %62, %61 : vector<1x32xf32>
    %cst_20 = arith.constant 1.000000e+00 : f32
    %64 = vector.broadcast %cst_20 : f32 to vector<1x32xf32>
    %65 = arith.subf %63, %64 : vector<1x32xf32>
    %66 = vector.extract_strided_slice %58 {offsets = [0, 96], sizes = [1, 32], strides = [1, 1]} : vector<1x128xf32> to vector<1x32xf32>
    %67 = arith.mulf %60, %48 : vector<1x32xf32>
    %68 = arith.mulf %59, %65 : vector<1x32xf32>
    %69 = arith.addf %67, %68 : vector<1x32xf32>
    %70 = math.tanh %69 : vector<1x32xf32>
    %71 = arith.mulf %66, %70 : vector<1x32xf32>
    %72 = vector.extract_strided_slice %5 {offsets = [3, 0], sizes = [1, 128], strides = [1, 1]} : vector<8x128xf32> to vector<1x128xf32>
    %cst_21 = arith.constant dense<0.000000e+00> : vector<1x128xf32>
    %73 = tpu.matmul %71, %6, %cst_21 {dimension_numbers = #tpu.dot_dimension_numbers<[1], [0], [0], [1], [0, 0, 1, 1], [], []>} : vector<1x32xf32>, vector<32x128xf32>, vector<1x128xf32> -> vector<1x128xf32>
    %74 = arith.addf %72, %73 : vector<1x128xf32>
    %75 = arith.negf %74 : vector<1x128xf32>
    %76 = math.exp %75 : vector<1x128xf32>
    %cst_22 = arith.constant 1.000000e+00 : f32
    %77 = vector.broadcast %cst_22 : f32 to vector<1x128xf32>
    %78 = arith.addf %77, %76 : vector<1x128xf32>
    %79 = arith.divf %77, %78 : vector<1x128xf32>
    %80 = vector.extract_strided_slice %79 {offsets = [0, 0], sizes = [1, 32], strides = [1, 1]} : vector<1x128xf32> to vector<1x32xf32>
    %81 = vector.extract_strided_slice %79 {offsets = [0, 32], sizes = [1, 32], strides = [1, 1]} : vector<1x128xf32> to vector<1x32xf32>
    %82 = vector.extract_strided_slice %79 {offsets = [0, 64], sizes = [1, 32], strides = [1, 1]} : vector<1x128xf32> to vector<1x32xf32>
    %cst_23 = arith.constant 2.000000e+00 : f32
    %83 = vector.broadcast %cst_23 : f32 to vector<1x32xf32>
    %84 = arith.mulf %83, %82 : vector<1x32xf32>
    %cst_24 = arith.constant 1.000000e+00 : f32
    %85 = vector.broadcast %cst_24 : f32 to vector<1x32xf32>
    %86 = arith.subf %84, %85 : vector<1x32xf32>
    %87 = vector.extract_strided_slice %79 {offsets = [0, 96], sizes = [1, 32], strides = [1, 1]} : vector<1x128xf32> to vector<1x32xf32>
    %88 = arith.mulf %81, %69 : vector<1x32xf32>
    %89 = arith.mulf %80, %86 : vector<1x32xf32>
    %90 = arith.addf %88, %89 : vector<1x32xf32>
    %91 = math.tanh %90 : vector<1x32xf32>
    %92 = arith.mulf %87, %91 : vector<1x32xf32>
    %93 = vector.extract_strided_slice %5 {offsets = [4, 0], sizes = [1, 128], strides = [1, 1]} : vector<8x128xf32> to vector<1x128xf32>
    %cst_25 = arith.constant dense<0.000000e+00> : vector<1x128xf32>
    %94 = tpu.matmul %92, %6, %cst_25 {dimension_numbers = #tpu.dot_dimension_numbers<[1], [0], [0], [1], [0, 0, 1, 1], [], []>} : vector<1x32xf32>, vector<32x128xf32>, vector<1x128xf32> -> vector<1x128xf32>
    %95 = arith.addf %93, %94 : vector<1x128xf32>
    %96 = arith.negf %95 : vector<1x128xf32>
    %97 = math.exp %96 : vector<1x128xf32>
    %cst_26 = arith.constant 1.000000e+00 : f32
    %98 = vector.broadcast %cst_26 : f32 to vector<1x128xf32>
    %99 = arith.addf %98, %97 : vector<1x128xf32>
    %100 = arith.divf %98, %99 : vector<1x128xf32>
    %101 = vector.extract_strided_slice %100 {offsets = [0, 0], sizes = [1, 32], strides = [1, 1]} : vector<1x128xf32> to vector<1x32xf32>
    %102 = vector.extract_strided_slice %100 {offsets = [0, 32], sizes = [1, 32], strides = [1, 1]} : vector<1x128xf32> to vector<1x32xf32>
    %103 = vector.extract_strided_slice %100 {offsets = [0, 64], sizes = [1, 32], strides = [1, 1]} : vector<1x128xf32> to vector<1x32xf32>
    %cst_27 = arith.constant 2.000000e+00 : f32
    %104 = vector.broadcast %cst_27 : f32 to vector<1x32xf32>
    %105 = arith.mulf %104, %103 : vector<1x32xf32>
    %cst_28 = arith.constant 1.000000e+00 : f32
    %106 = vector.broadcast %cst_28 : f32 to vector<1x32xf32>
    %107 = arith.subf %105, %106 : vector<1x32xf32>
    %108 = vector.extract_strided_slice %100 {offsets = [0, 96], sizes = [1, 32], strides = [1, 1]} : vector<1x128xf32> to vector<1x32xf32>
    %109 = arith.mulf %102, %90 : vector<1x32xf32>
    %110 = arith.mulf %101, %107 : vector<1x32xf32>
    %111 = arith.addf %109, %110 : vector<1x32xf32>
    %112 = math.tanh %111 : vector<1x32xf32>
    %113 = arith.mulf %108, %112 : vector<1x32xf32>
    %114 = vector.extract_strided_slice %5 {offsets = [5, 0], sizes = [1, 128], strides = [1, 1]} : vector<8x128xf32> to vector<1x128xf32>
    %cst_29 = arith.constant dense<0.000000e+00> : vector<1x128xf32>
    %115 = tpu.matmul %113, %6, %cst_29 {dimension_numbers = #tpu.dot_dimension_numbers<[1], [0], [0], [1], [0, 0, 1, 1], [], []>} : vector<1x32xf32>, vector<32x128xf32>, vector<1x128xf32> -> vector<1x128xf32>
    %116 = arith.addf %114, %115 : vector<1x128xf32>
    %117 = arith.negf %116 : vector<1x128xf32>
    %118 = math.exp %117 : vector<1x128xf32>
    %cst_30 = arith.constant 1.000000e+00 : f32
    %119 = vector.broadcast %cst_30 : f32 to vector<1x128xf32>
    %120 = arith.addf %119, %118 : vector<1x128xf32>
    %121 = arith.divf %119, %120 : vector<1x128xf32>
    %122 = vector.extract_strided_slice %121 {offsets = [0, 0], sizes = [1, 32], strides = [1, 1]} : vector<1x128xf32> to vector<1x32xf32>
    %123 = vector.extract_strided_slice %121 {offsets = [0, 32], sizes = [1, 32], strides = [1, 1]} : vector<1x128xf32> to vector<1x32xf32>
    %124 = vector.extract_strided_slice %121 {offsets = [0, 64], sizes = [1, 32], strides = [1, 1]} : vector<1x128xf32> to vector<1x32xf32>
    %cst_31 = arith.constant 2.000000e+00 : f32
    %125 = vector.broadcast %cst_31 : f32 to vector<1x32xf32>
    %126 = arith.mulf %125, %124 : vector<1x32xf32>
    %cst_32 = arith.constant 1.000000e+00 : f32
    %127 = vector.broadcast %cst_32 : f32 to vector<1x32xf32>
    %128 = arith.subf %126, %127 : vector<1x32xf32>
    %129 = vector.extract_strided_slice %121 {offsets = [0, 96], sizes = [1, 32], strides = [1, 1]} : vector<1x128xf32> to vector<1x32xf32>
    %130 = arith.mulf %123, %111 : vector<1x32xf32>
    %131 = arith.mulf %122, %128 : vector<1x32xf32>
    %132 = arith.addf %130, %131 : vector<1x32xf32>
    %133 = math.tanh %132 : vector<1x32xf32>
    %134 = arith.mulf %129, %133 : vector<1x32xf32>
    %135 = vector.extract_strided_slice %5 {offsets = [6, 0], sizes = [1, 128], strides = [1, 1]} : vector<8x128xf32> to vector<1x128xf32>
    %cst_33 = arith.constant dense<0.000000e+00> : vector<1x128xf32>
    %136 = tpu.matmul %134, %6, %cst_33 {dimension_numbers = #tpu.dot_dimension_numbers<[1], [0], [0], [1], [0, 0, 1, 1], [], []>} : vector<1x32xf32>, vector<32x128xf32>, vector<1x128xf32> -> vector<1x128xf32>
    %137 = arith.addf %135, %136 : vector<1x128xf32>
    %138 = arith.negf %137 : vector<1x128xf32>
    %139 = math.exp %138 : vector<1x128xf32>
    %cst_34 = arith.constant 1.000000e+00 : f32
    %140 = vector.broadcast %cst_34 : f32 to vector<1x128xf32>
    %141 = arith.addf %140, %139 : vector<1x128xf32>
    %142 = arith.divf %140, %141 : vector<1x128xf32>
    %143 = vector.extract_strided_slice %142 {offsets = [0, 0], sizes = [1, 32], strides = [1, 1]} : vector<1x128xf32> to vector<1x32xf32>
    %144 = vector.extract_strided_slice %142 {offsets = [0, 32], sizes = [1, 32], strides = [1, 1]} : vector<1x128xf32> to vector<1x32xf32>
    %145 = vector.extract_strided_slice %142 {offsets = [0, 64], sizes = [1, 32], strides = [1, 1]} : vector<1x128xf32> to vector<1x32xf32>
    %cst_35 = arith.constant 2.000000e+00 : f32
    %146 = vector.broadcast %cst_35 : f32 to vector<1x32xf32>
    %147 = arith.mulf %146, %145 : vector<1x32xf32>
    %cst_36 = arith.constant 1.000000e+00 : f32
    %148 = vector.broadcast %cst_36 : f32 to vector<1x32xf32>
    %149 = arith.subf %147, %148 : vector<1x32xf32>
    %150 = vector.extract_strided_slice %142 {offsets = [0, 96], sizes = [1, 32], strides = [1, 1]} : vector<1x128xf32> to vector<1x32xf32>
    %151 = arith.mulf %144, %132 : vector<1x32xf32>
    %152 = arith.mulf %143, %149 : vector<1x32xf32>
    %153 = arith.addf %151, %152 : vector<1x32xf32>
    %154 = math.tanh %153 : vector<1x32xf32>
    %155 = arith.mulf %150, %154 : vector<1x32xf32>
    %156 = vector.extract_strided_slice %5 {offsets = [7, 0], sizes = [1, 128], strides = [1, 1]} : vector<8x128xf32> to vector<1x128xf32>
    %cst_37 = arith.constant dense<0.000000e+00> : vector<1x128xf32>
    %157 = tpu.matmul %155, %6, %cst_37 {dimension_numbers = #tpu.dot_dimension_numbers<[1], [0], [0], [1], [0, 0, 1, 1], [], []>} : vector<1x32xf32>, vector<32x128xf32>, vector<1x128xf32> -> vector<1x128xf32>
    %158 = arith.addf %156, %157 : vector<1x128xf32>
    %159 = arith.negf %158 : vector<1x128xf32>
    %160 = math.exp %159 : vector<1x128xf32>
    %cst_38 = arith.constant 1.000000e+00 : f32
    %161 = vector.broadcast %cst_38 : f32 to vector<1x128xf32>
    %162 = arith.addf %161, %160 : vector<1x128xf32>
    %163 = arith.divf %161, %162 : vector<1x128xf32>
    %164 = vector.extract_strided_slice %163 {offsets = [0, 0], sizes = [1, 32], strides = [1, 1]} : vector<1x128xf32> to vector<1x32xf32>
    %165 = vector.extract_strided_slice %163 {offsets = [0, 32], sizes = [1, 32], strides = [1, 1]} : vector<1x128xf32> to vector<1x32xf32>
    %166 = vector.extract_strided_slice %163 {offsets = [0, 64], sizes = [1, 32], strides = [1, 1]} : vector<1x128xf32> to vector<1x32xf32>
    %cst_39 = arith.constant 2.000000e+00 : f32
    %167 = vector.broadcast %cst_39 : f32 to vector<1x32xf32>
    %168 = arith.mulf %167, %166 : vector<1x32xf32>
    %cst_40 = arith.constant 1.000000e+00 : f32
    %169 = vector.broadcast %cst_40 : f32 to vector<1x32xf32>
    %170 = arith.subf %168, %169 : vector<1x32xf32>
    %171 = vector.extract_strided_slice %163 {offsets = [0, 96], sizes = [1, 32], strides = [1, 1]} : vector<1x128xf32> to vector<1x32xf32>
    %172 = arith.mulf %165, %153 : vector<1x32xf32>
    %173 = arith.mulf %164, %170 : vector<1x32xf32>
    %174 = arith.addf %172, %173 : vector<1x32xf32>
    %175 = math.tanh %174 : vector<1x32xf32>
    %176 = arith.mulf %171, %175 : vector<1x32xf32>
    %c0_41 = arith.constant 0 : index
    %c0_42 = arith.constant 0 : index
    %177 = vector.load %arg4[%c0_41, %c0_42] : memref<32x128xf32, #tpu.memory_space<vmem>>, vector<32x128xf32>
    %cst_43 = arith.constant dense<0.000000e+00> : vector<1x128xf32>
    %178 = tpu.matmul %176, %177, %cst_43 {dimension_numbers = #tpu.dot_dimension_numbers<[1], [0], [0], [1], [0, 0, 1, 1], [], []>} : vector<1x32xf32>, vector<32x128xf32>, vector<1x128xf32> -> vector<1x128xf32>
    %c0_44 = arith.constant 0 : index
    %c0_45 = arith.constant 0 : index
    %179 = vector.load %arg5[%c0_44, %c0_45] : memref<1x128xf32, #tpu.memory_space<vmem>>, vector<1x128xf32>
    %180 = arith.addf %178, %179 : vector<1x128xf32>
    %cst_46 = arith.constant dense<0xFF800000> : vector<1xf32>
    %181 = vector.multi_reduction <maximumf>, %180, %cst_46 [1] : vector<1x128xf32> to vector<1xf32>
    %182 = vector.shape_cast %181 : vector<1xf32> to vector<1x1xf32>
    %183 = vector.broadcast %182 : vector<1x1xf32> to vector<1x128xf32>
    %184 = arith.subf %180, %183 : vector<1x128xf32>
    %185 = math.exp %184 : vector<1x128xf32>
    %cst_47 = arith.constant dense<0.000000e+00> : vector<1xf32>
    %186 = vector.multi_reduction <add>, %185, %cst_47 [1] : vector<1x128xf32> to vector<1xf32>
    %187 = vector.shape_cast %186 : vector<1xf32> to vector<1x1xf32>
    %188 = tpu.reciprocal %187 {approx = true} : vector<1x1xf32> -> vector<1x1xf32>
    %189 = vector.broadcast %188 : vector<1x1xf32> to vector<1x128xf32>
    %190 = arith.mulf %185, %189 : vector<1x128xf32>
    %c0_48 = arith.constant 0 : index
    %c0_49 = arith.constant 0 : index
    %191 = vector.load %arg6[%c0_48, %c0_49] : memref<1x128xf32, #tpu.memory_space<vmem>>, vector<1x128xf32>
    tpu.vector_store %arg6[%c0_48, %c0_49], %190 {strides = array<i32>} : memref<1x128xf32, #tpu.memory_space<vmem>>, vector<1x128xf32>,
    return
  }
}

</mosaic_0001>

<llo_original>
// kernel: tpu_custom_call.1
$region0: #{tpu_custom_call.1}
  #allocation0 [shape = 'u32[]', space=smem, size = 0x4, offset = 0x4, fixed_abs, tag = 'smem constant byte address 0x4 - core index']
  #allocation1 [shape = 'u32[144,128]{1,0:T(1,128)}', space=vmem, size = 0x12000, scoped, tag = 'internal scratch']
  %s0 = inlined_call_operand.hbm [shape: f32[8,16], index: 0, kind: input, shape index: {}]
  %s1 = inlined_call_operand.hbm [shape: f32[16,128], index: 1, kind: input, shape index: {}]
  %s2 = inlined_call_operand.hbm [shape: f32[32,128], index: 2, kind: input, shape index: {}]
  %s3 = inlined_call_operand.vmem [shape: f32[1,128], index: 3, kind: input, shape index: {}]
  %s4 = inlined_call_operand.hbm [shape: f32[32,128], index: 4, kind: input, shape index: {}]
  %s5 = inlined_call_operand.vmem [shape: f32[1,128], index: 5, kind: input, shape index: {}]
  %s6 = inlined_call_operand.hbm [shape: f32[1,128], index: 6, kind: output, shape index: {}]
  %s7 = sld [smem:[#allocation0]]
  $region50: #{tpu_custom_call.1} parent=0
    _
  %s9 = ssub.s32 1, %s7
  %s10 = scalar_select 0, %s9, %s7
  $region1: #{tpu_custom_call.1} parent=0
    #allocation2 [shape = 'u8[4096]{0}', space=vmem, size = 0x1000, scoped, tag = 'input window, operand 0, single buffered']
    #allocation3 [shape = 's32[1]{0}', space=sflag, size = 0x4, scoped, tag = 'scoped memory for tpu_custom_call.1']
    #allocation4 [shape = 's32[1]{0}', space=sflag, size = 0x4, scoped, tag = 'scoped memory for tpu_custom_call.1']
    #allocation5 [shape = 'u8[8192]{0}', space=vmem, size = 0x2000, scoped, tag = 'input window, operand 1, single buffered']
    #allocation6 [shape = 's32[1]{0}', space=sflag, size = 0x4, scoped, tag = 'scoped memory for tpu_custom_call.1']
    #allocation7 [shape = 'u8[16384]{0}', space=vmem, size = 0x4000, scoped, tag = 'input window, operand 2, single buffered']
    #allocation8 [shape = 'u8[16384]{0}', space=vmem, size = 0x4000, scoped, tag = 'input window, operand 4, single buffered']
    #allocation9 [shape = 's32[1]{0}', space=sflag, size = 0x4, scoped, tag = 'scoped memory for tpu_custom_call.1']
    #allocation10 [shape = 'u8[512]{0}', space=vmem, size = 0x400, scoped, tag = 'output window, operand 0, single buffered']
    %11 = vsyncpa [#allocation3], 0
    %12 = vsyncpa [#allocation6], 0
    %13 = vsyncpa [#allocation9], 0
    %14 = vsyncpa [#allocation4], 0
    // Predicated region
    $region2: #{tpu_custom_call.1} parent=1 // pred_check
      _
    $region3: #{tpu_custom_call.1} parent=1 // pred_check_branch
      %16 = sbr.rel (0) target = $region5
    $region4: #{tpu_custom_call.1} parent=1 // pred_region
      %s18 = ssub.s32 128, 128
      %19 = vsyncadd [#allocation3], %s18
      %s21 = sshll.u32 [#allocation2], 4
      %s22 = int_to_ptr.vmem [resolvable:$true] %s21
      %24 = dma.hbm_to_vmem [thread:$0]  %s0, 128, %s22, [#allocation3]
    $region5: #{tpu_custom_call.1} parent=1 // pred_fallthru
      _
    // Predicated region
    $region6: #{tpu_custom_call.1} parent=1 // pred_check
      _
    $region7: #{tpu_custom_call.1} parent=1 // pred_check_branch
      %26 = sbr.rel (0) target = $region9
    $region8: #{tpu_custom_call.1} parent=1 // pred_region
      %s28 = ssub.s32 256, 256
      %29 = vsyncadd [#allocation6], %s28
      %s30 = sshll.u32 [#allocation5], 4
      %s31 = int_to_ptr.vmem [resolvable:$true] %s30
      %36 = dma.hbm_to_vmem [thread:$0]  %s1, 256, %s31, [#allocation6], 128, 128, 8
    $region9: #{tpu_custom_call.1} parent=1 // pred_fallthru
      _
    // Predicated region
    $region10: #{tpu_custom_call.1} parent=1 // pred_check
      _
    $region11: #{tpu_custom_call.1} parent=1 // pred_check_branch
      %38 = sbr.rel (0) target = $region13
    $region12: #{tpu_custom_call.1} parent=1 // pred_region
      %s40 = ssub.s32 512, 512
      %41 = vsyncadd [#allocation6], %s40
      %s42 = sshll.u32 [#allocation7], 4
      %s43 = int_to_ptr.vmem [resolvable:$true] %s42
      %48 = dma.hbm_to_vmem [thread:$0]  %s2, 512, %s43, [#allocation6], 128, 128, 8
    $region13: #{tpu_custom_call.1} parent=1 // pred_fallthru
      _
    // Predicated region
    $region14: #{tpu_custom_call.1} parent=1 // pred_check
      _
    $region15: #{tpu_custom_call.1} parent=1 // pred_check_branch
      %50 = sbr.rel (0) target = $region17
    $region16: #{tpu_custom_call.1} parent=1 // pred_region
      _
    $region17: #{tpu_custom_call.1} parent=1 // pred_fallthru
      _
    // Predicated region
    $region18: #{tpu_custom_call.1} parent=1 // pred_check
      _
    $region19: #{tpu_custom_call.1} parent=1 // pred_check_branch
      %52 = sbr.rel (0) target = $region21
    $region20: #{tpu_custom_call.1} parent=1 // pred_region
      %s54 = ssub.s32 512, 512
      %55 = vsyncadd [#allocation9], %s54
      %s56 = sshll.u32 [#allocation8], 4
      %s57 = int_to_ptr.vmem [resolvable:$true] %s56
      %62 = dma.hbm_to_vmem [thread:$0]  %s4, 512, %s57, [#allocation9], 128, 128, 8
    $region21: #{tpu_custom_call.1} parent=1 // pred_fallthru
      _
    // Predicated region
    $region22: #{tpu_custom_call.1} parent=1 // pred_check
      _
    $region23: #{tpu_custom_call.1} parent=1 // pred_check_branch
      %64 = sbr.rel (0) target = $region25
    $region24: #{tpu_custom_call.1} parent=1 // pred_region
      _
    $region25: #{tpu_custom_call.1} parent=1 // pred_fallthru
      _
    // Predicated region
    $region26: #{tpu_custom_call.1} parent=1 // pred_check
      _
    $region27: #{tpu_custom_call.1} parent=1 // pred_check_branch
      %66 = sbr.rel (0) target = $region29
    $region28: #{tpu_custom_call.1} parent=1 // pred_region
      %67 = dma.done [#allocation3], 128
    $region29: #{tpu_custom_call.1} parent=1 // pred_fallthru
      _
    // Predicated region
    $region30: #{tpu_custom_call.1} parent=1 // pred_check
      _
    $region31: #{tpu_custom_call.1} parent=1 // pred_check_branch
      %69 = sbr.rel (0) target = $region33
    $region32: #{tpu_custom_call.1} parent=1 // pred_region
      %70 = dma.done [#allocation6], 256
    $region33: #{tpu_custom_call.1} parent=1 // pred_fallthru
      _
    // Predicated region
    $region34: #{tpu_custom_call.1} parent=1 // pred_check
      _
    $region35: #{tpu_custom_call.1} parent=1 // pred_check_branch
      %72 = sbr.rel (0) target = $region37
    $region36: #{tpu_custom_call.1} parent=1 // pred_region
      %73 = dma.done [#allocation6], 512
    $region37: #{tpu_custom_call.1} parent=1 // pred_fallthru
      _
    // Predicated region
    $region38: #{tpu_custom_call.1} parent=1 // pred_check
      _
    $region39: #{tpu_custom_call.1} parent=1 // pred_check_branch
      %75 = sbr.rel (0) target = $region41
    $region40: #{tpu_custom_call.1} parent=1 // pred_region
      %76 = dma.done [#allocation9], 512
    $region41: #{tpu_custom_call.1} parent=1 // pred_fallthru
      _
    %v77 = vld [vmem:[#allocation2] sm:$0xff]
    %v78 = vld [vmem:[#allocation5] sm:$0xff]
    %v79 = vld [vmem:[#allocation5 + $0x8] sm:$0xff]
    %v80 = vld [vmem:[%s3] sm:$0x1]
    %v82 = vlaneseq
    %v83 = vshrl.u32 %v82, 7
    %v84 = vsub.s32 0, %v83
    %v85 = vrot.slane %v80, %v84
    %vm87 = vcmask 130048
    %v89 = vsel %vm87, %v77, 0
    %91 = vmatprep.subr.mxu0 0.0
    %92 = vmatpush1.msra.mxu0 %v78
    %93 = vmatprep.subr.mxu0 0.0
    %94 = vmatpush1.msra.mxu0 %v79
    %95 = vmatprep.subr.mxu0 0.0
    %96 = vmatpush1.msra.mxu0 0.0
    %97 = vmatprep.subr.mxu0 0.0
    %98 = vmatpush1.msra.mxu0 0.0
    %99 = vmatprep.subr.mxu0 0.0
    %100 = vmatpush1.msra.mxu0 0.0
    %101 = vmatprep.subr.mxu0 0.0
    %102 = vmatpush1.msra.mxu0 0.0
    %103 = vmatprep.subr.mxu0 0.0
    %104 = vmatpush1.msra.mxu0 0.0
    %105 = vmatprep.subr.mxu0 0.0
    %106 = vmatpush1.msra.mxu0 0.0
    %107 = vmatprep.subr.mxu0 0.0
    %108 = vmatpush1.msra.mxu0 0.0
    %109 = vmatprep.subr.mxu0 0.0
    %110 = vmatpush1.msra.mxu0 0.0
    %111 = vmatprep.subr.mxu0 0.0
    %112 = vmatpush1.msra.mxu0 0.0
    %113 = vmatprep.subr.mxu0 0.0
    %114 = vmatpush1.msra.mxu0 0.0
    %115 = vmatprep.subr.mxu0 0.0
    %116 = vmatpush1.msra.mxu0 0.0
    %117 = vmatprep.subr.mxu0 0.0
    %118 = vmatpush1.msra.mxu0 0.0
    %119 = vmatprep.subr.mxu0 0.0
    %120 = vmatpush1.msra.mxu0 0.0
    %121 = vmatprep.subr.mxu0 0.0
    %122 = vmatpush1.msra.mxu0 0.0
    %123 = vmatprep.subr.mxu0 0.0
    %124 = vmatpush1.msra.mxu0 0.0
    %125 = vmatprep.subr.mxu0 0.0
    %126 = vmatpush1.msra.mxu0 0.0
    %127 = vmatprep.subr.mxu0 0.0
    %128 = vmatpush1.msra.mxu0 0.0
    %129 = vmatprep.subr.mxu0 0.0
    %130 = vmatpush1.msra.mxu0 0.0
    %131 = vmatprep.subr.mxu0 0.0
    %132 = vmatpush1.msra.mxu0 0.0
    %133 = vmatprep.subr.mxu0 0.0
    %134 = vmatpush1.msra.mxu0 0.0
    %135 = vmatprep.subr.mxu0 0.0
    %136 = vmatpush1.msra.mxu0 0.0
    %137 = vmatprep.subr.mxu0 0.0
    %138 = vmatpush1.msra.mxu0 0.0
    %139 = vmatprep.subr.mxu0 0.0
    %140 = vmatpush1.msra.mxu0 0.0
    %141 = vmatprep.subr.mxu0 0.0
    %142 = vmatpush1.msra.mxu0 0.0
    %143 = vmatprep.subr.mxu0 0.0
    %144 = vmatpush1.msra.mxu0 0.0
    %145 = vmatprep.subr.mxu0 0.0
    %146 = vmatpush1.msra.mxu0 0.0
    %147 = vmatprep.subr.mxu0 0.0
    %148 = vmatpush1.msra.mxu0 0.0
    %149 = vmatprep.subr.mxu0 0.0
    %150 = vmatpush1.msra.mxu0 0.0
    %151 = vmatprep.subr.mxu0 0.0
    %152 = vmatpush1.msra.mxu0 0.0
    %153 = vmatprep.subr.mxu0 0.0
    %154 = vmatpush1.msra.mxu0 0.0
    %155 = vmatprep.mubr.f32.mxu0 0.0
    %156 = vmatmul.mubr.f32.gmra.mrb[0].mxu0 %v89
    %v157 = vpop.f32.mrb[0].mxu0
    %v158 = vadd.f32 %v85, %v157
    %v159 = vpop.f32.mrb[0].mxu0
    %160 = vdwg.mxu0
    %v161 = vld [vmem:[#allocation7] sm:$0xff]
    %v162 = vld [vmem:[#allocation7 + $0x8] sm:$0xff]
    %v163 = vld [vmem:[#allocation7 + $0x10] sm:$0xff]
    %v164 = vld [vmem:[#allocation7 + $0x18] sm:$0xff]
    %vm165 = vcmask 261120
    %v167 = vsel %vm165, 0.0, 0
    %169 = vmatprep.subr.mxu0 0.0
    %170 = vmatpush1.msra.mxu0 %v161
    %171 = vmatprep.subr.mxu0 0.0
    %172 = vmatpush1.msra.mxu0 %v162
    %173 = vmatprep.subr.mxu0 0.0
    %174 = vmatpush1.msra.mxu0 %v163
    %175 = vmatprep.subr.mxu0 0.0
    %176 = vmatpush1.msra.mxu0 %v164
    %177 = vmatprep.subr.mxu0 0.0
    %178 = vmatpush1.msra.mxu0 0.0
    %179 = vmatprep.subr.mxu0 0.0
    %180 = vmatpush1.msra.mxu0 0.0
    %181 = vmatprep.subr.mxu0 0.0
    %182 = vmatpush1.msra.mxu0 0.0
    %183 = vmatprep.subr.mxu0 0.0
    %184 = vmatpush1.msra.mxu0 0.0
    %185 = vmatprep.subr.mxu0 0.0
    %186 = vmatpush1.msra.mxu0 0.0
    %187 = vmatprep.subr.mxu0 0.0
    %188 = vmatpush1.msra.mxu0 0.0
    %189 = vmatprep.subr.mxu0 0.0
    %190 = vmatpush1.msra.mxu0 0.0
    %191 = vmatprep.subr.mxu0 0.0
    %192 = vmatpush1.msra.mxu0 0.0
    %193 = vmatprep.subr.mxu0 0.0
    %194 = vmatpush1.msra.mxu0 0.0
    %195 = vmatprep.subr.mxu0 0.0
    %196 = vmatpush1.msra.mxu0 0.0
    %197 = vmatprep.subr.mxu0 0.0
    %198 = vmatpush1.msra.mxu0 0.0
    %199 = vmatprep.subr.mxu0 0.0
    %200 = vmatpush1.msra.mxu0 0.0
    %201 = vmatprep.subr.mxu0 0.0
    %202 = vmatpush1.msra.mxu0 0.0
    %203 = vmatprep.subr.mxu0 0.0
    %204 = vmatpush1.msra.mxu0 0.0
    %205 = vmatprep.subr.mxu0 0.0
    %206 = vmatpush1.msra.mxu0 0.0
    %207 = vmatprep.subr.mxu0 0.0
    %208 = vmatpush1.msra.mxu0 0.0
    %209 = vmatprep.subr.mxu0 0.0
    %210 = vmatpush1.msra.mxu0 0.0
    %211 = vmatprep.subr.mxu0 0.0
    %212 = vmatpush1.msra.mxu0 0.0
    %213 = vmatprep.subr.mxu0 0.0
    %214 = vmatpush1.msra.mxu0 0.0
    %215 = vmatprep.subr.mxu0 0.0
    %216 = vmatpush1.msra.mxu0 0.0
    %217 = vmatprep.subr.mxu0 0.0
    %218 = vmatpush1.msra.mxu0 0.0
    %219 = vmatprep.subr.mxu0 0.0
    %220 = vmatpush1.msra.mxu0 0.0
    %221 = vmatprep.subr.mxu0 0.0
    %222 = vmatpush1.msra.mxu0 0.0
    %223 = vmatprep.subr.mxu0 0.0
    %224 = vmatpush1.msra.mxu0 0.0
    %225 = vmatprep.subr.mxu0 0.0
    %226 = vmatpush1.msra.mxu0 0.0
    %227 = vmatprep.subr.mxu0 0.0
    %228 = vmatpush1.msra.mxu0 0.0
    %229 = vmatprep.subr.mxu0 0.0
    %230 = vmatpush1.msra.mxu0 0.0
    %231 = vmatprep.subr.mxu0 0.0
    %232 = vmatpush1.msra.mxu0 0.0
    %233 = vmatprep.mubr.f32.mxu0 0.0
    %234 = vmatmul.mubr.f32.gmra.mrb[0].mxu0 %v167
    %v235 = vpop.f32.mrb[0].mxu0
    %v236 = vadd.f32 0.0, %v235
    %v237 = vpop.f32.mrb[0].mxu0
    %238 = vdwg.mxu0
    %v239 = vadd.f32 %v158, %v236
    %v240 = vxor.u32 %v239, 2147483648
    %v241 = vmul.f32 %v240, 1.442695
    %v242 = vpow.pop %v241
    %v243 = vadd.f32 %v242, 1.0
    %v244 = vrcp.pop %v243
    %v245 = vmul.f32 1.0, %v244
    %v246 = vmul.f32 %v245, 2.0
    %v247 = vsub.f32 %v246, 1.0
    %v248 = vmul.f32 %v245, 0.0
    %250 = vrot.lane.b32.xlu0 %v247, 64
    %v251 = vpop.permute.xlu0 %250
    %v253 = vmul.f32 %v245, %v251
    %255 = vrot.lane.b32.xlu0 %v253, 32
    %v256 = vpop.permute.xlu0 %255
    %v258 = vadd.f32 %v248, %v256
    %v259 = vtanh.pop %v258
    %261 = vrot.lane.b32.xlu0 %v259, 64
    %v262 = vpop.permute.xlu0 %261
    %v264 = vmul.f32 %v245, %v262
    %266 = vrot.lane.b32.xlu0 %v264, 32
    %v267 = vpop.permute.xlu0 %266
    %v268 = vsel %vm165, %v267, 0
    %270 = vmatprep.subr.mxu0 0.0
    %271 = vmatpush1.msra.mxu0 %v161
    %272 = vmatprep.subr.mxu0 0.0
    %273 = vmatpush1.msra.mxu0 %v162
    %274 = vmatprep.subr.mxu0 0.0
    %275 = vmatpush1.msra.mxu0 %v163
    %276 = vmatprep.subr.mxu0 0.0
    %277 = vmatpush1.msra.mxu0 %v164
    %278 = vmatprep.subr.mxu0 0.0
    %279 = vmatpush1.msra.mxu0 0.0
    %280 = vmatprep.subr.mxu0 0.0
    %281 = vmatpush1.msra.mxu0 0.0
    %282 = vmatprep.subr.mxu0 0.0
    %283 = vmatpush1.msra.mxu0 0.0
    %284 = vmatprep.subr.mxu0 0.0
    %285 = vmatpush1.msra.mxu0 0.0
    %286 = vmatprep.subr.mxu0 0.0
    %287 = vmatpush1.msra.mxu0 0.0
    %288 = vmatprep.subr.mxu0 0.0
    %289 = vmatpush1.msra.mxu0 0.0
    %290 = vmatprep.subr.mxu0 0.0
    %291 = vmatpush1.msra.mxu0 0.0
    %292 = vmatprep.subr.mxu0 0.0
    %293 = vmatpush1.msra.mxu0 0.0
    %294 = vmatprep.subr.mxu0 0.0
    %295 = vmatpush1.msra.mxu0 0.0
    %296 = vmatprep.subr.mxu0 0.0
    %297 = vmatpush1.msra.mxu0 0.0
    %298 = vmatprep.subr.mxu0 0.0
    %299 = vmatpush1.msra.mxu0 0.0
    %300 = vmatprep.subr.mxu0 0.0
    %301 = vmatpush1.msra.mxu0 0.0
    %302 = vmatprep.subr.mxu0 0.0
    %303 = vmatpush1.msra.mxu0 0.0
    %304 = vmatprep.subr.mxu0 0.0
    %305 = vmatpush1.msra.mxu0 0.0
    %306 = vmatprep.subr.mxu0 0.0
    %307 = vmatpush1.msra.mxu0 0.0
    %308 = vmatprep.subr.mxu0 0.0
    %309 = vmatpush1.msra.mxu0 0.0
    %310 = vmatprep.subr.mxu0 0.0
    %311 = vmatpush1.msra.mxu0 0.0
    %312 = vmatprep.subr.mxu0 0.0
    %313 = vmatpush1.msra.mxu0 0.0
    %314 = vmatprep.subr.mxu0 0.0
    %315 = vmatpush1.msra.mxu0 0.0
    %316 = vmatprep.subr.mxu0 0.0
    %317 = vmatpush1.msra.mxu0 0.0
    %318 = vmatprep.subr.mxu0 0.0
    %319 = vmatpush1.msra.mxu0 0.0
    %320 = vmatprep.subr.mxu0 0.0
    %321 = vmatpush1.msra.mxu0 0.0
    %322 = vmatprep.subr.mxu0 0.0
    %323 = vmatpush1.msra.mxu0 0.0
    %324 = vmatprep.subr.mxu0 0.0
    %325 = vmatpush1.msra.mxu0 0.0
    %326 = vmatprep.subr.mxu0 0.0
    %327 = vmatpush1.msra.mxu0 0.0
    %328 = vmatprep.subr.mxu0 0.0
    %329 = vmatpush1.msra.mxu0 0.0
    %330 = vmatprep.subr.mxu0 0.0
    %331 = vmatpush1.msra.mxu0 0.0
    %332 = vmatprep.subr.mxu0 0.0
    %333 = vmatpush1.msra.mxu0 0.0
    %334 = vmatprep.mubr.f32.mxu0 0.0
    %335 = vmatmul.mubr.f32.gmra.mrb[0].mxu0 %v268
    %v336 = vpop.f32.mrb[0].mxu0
    %v337 = vadd.f32 0.0, %v336
    %v338 = vpop.f32.mrb[0].mxu0
    %339 = vdwg.mxu0
    %v341 = vrot.slane %v337, 7
    %v343 = vadd.f32 %v158, %v341
    %v344 = vxor.u32 %v343, 2147483648
    %v345 = vmul.f32 %v344, 1.442695
    %v346 = vpow.pop %v345
    %v347 = vadd.f32 %v346, 1.0
    %v348 = vrcp.pop %v347
    %v349 = vmul.f32 1.0, %v348
    %v350 = vmul.f32 %v349, 2.0
    %v351 = vsub.f32 %v350, 1.0
    %v353 = vrot.slane %v258, 7
    %v355 = vmul.f32 %v349, %v353
    %357 = vrot.lane.b32.xlu0 %v351, 64
    %v358 = vpop.permute.xlu0 %357
    %v360 = vmul.f32 %v349, %v358
    %362 = vrot.lane.b32.xlu0 %v360, 32
    %v363 = vpop.permute.xlu0 %362
    %v365 = vadd.f32 %v355, %v363
    %v366 = vtanh.pop %v365
    %368 = vrot.lane.b32.xlu0 %v366, 64
    %v369 = vpop.permute.xlu0 %368
    %v371 = vmul.f32 %v349, %v369
    %v373 = vrot.slane %v371, 1
    %374 = vrot.lane.b32.xlu0 %v373, 32
    %v375 = vpop.permute.xlu0 %374
    %v376 = vsel %vm165, %v375, 0
    %378 = vmatprep.subr.mxu0 0.0
    %379 = vmatpush1.msra.mxu0 %v161
    %380 = vmatprep.subr.mxu0 0.0
    %381 = vmatpush1.msra.mxu0 %v162
    %382 = vmatprep.subr.mxu0 0.0
    %383 = vmatpush1.msra.mxu0 %v163
    %384 = vmatprep.subr.mxu0 0.0
    %385 = vmatpush1.msra.mxu0 %v164
    %386 = vmatprep.subr.mxu0 0.0
    %387 = vmatpush1.msra.mxu0 0.0
    %388 = vmatprep.subr.mxu0 0.0
    %389 = vmatpush1.msra.mxu0 0.0
    %390 = vmatprep.subr.mxu0 0.0
    %391 = vmatpush1.msra.mxu0 0.0
    %392 = vmatprep.subr.mxu0 0.0
    %393 = vmatpush1.msra.mxu0 0.0
    %394 = vmatprep.subr.mxu0 0.0
    %395 = vmatpush1.msra.mxu0 0.0
    %396 = vmatprep.subr.mxu0 0.0
    %397 = vmatpush1.msra.mxu0 0.0
    %398 = vmatprep.subr.mxu0 0.0
    %399 = vmatpush1.msra.mxu0 0.0
    %400 = vmatprep.subr.mxu0 0.0
    %401 = vmatpush1.msra.mxu0 0.0
    %402 = vmatprep.subr.mxu0 0.0
    %403 = vmatpush1.msra.mxu0 0.0
    %404 = vmatprep.subr.mxu0 0.0
    %405 = vmatpush1.msra.mxu0 0.0
    %406 = vmatprep.subr.mxu0 0.0
    %407 = vmatpush1.msra.mxu0 0.0
    %408 = vmatprep.subr.mxu0 0.0
    %409 = vmatpush1.msra.mxu0 0.0
    %410 = vmatprep.subr.mxu0 0.0
    %411 = vmatpush1.msra.mxu0 0.0
    %412 = vmatprep.subr.mxu0 0.0
    %413 = vmatpush1.msra.mxu0 0.0
    %414 = vmatprep.subr.mxu0 0.0
    %415 = vmatpush1.msra.mxu0 0.0
    %416 = vmatprep.subr.mxu0 0.0
    %417 = vmatpush1.msra.mxu0 0.0
    %418 = vmatprep.subr.mxu0 0.0
    %419 = vmatpush1.msra.mxu0 0.0
    %420 = vmatprep.subr.mxu0 0.0
    %421 = vmatpush1.msra.mxu0 0.0
    %422 = vmatprep.subr.mxu0 0.0
    %423 = vmatpush1.msra.mxu0 0.0
    %424 = vmatprep.subr.mxu0 0.0
    %425 = vmatpush1.msra.mxu0 0.0
    %426 = vmatprep.subr.mxu0 0.0
    %427 = vmatpush1.msra.mxu0 0.0
    %428 = vmatprep.subr.mxu0 0.0
    %429 = vmatpush1.msra.mxu0 0.0
    %430 = vmatprep.subr.mxu0 0.0
    %431 = vmatpush1.msra.mxu0 0.0
    %432 = vmatprep.subr.mxu0 0.0
    %433 = vmatpush1.msra.mxu0 0.0
    %434 = vmatprep.subr.mxu0 0.0
    %435 = vmatpush1.msra.mxu0 0.0
    %436 = vmatprep.subr.mxu0 0.0
    %437 = vmatpush1.msra.mxu0 0.0
    %438 = vmatprep.subr.mxu0 0.0
    %439 = vmatpush1.msra.mxu0 0.0
    %440 = vmatprep.subr.mxu0 0.0
    %441 = vmatpush1.msra.mxu0 0.0
    %442 = vmatprep.mubr.f32.mxu0 0.0
    %443 = vmatmul.mubr.f32.gmra.mrb[0].mxu0 %v376
    %v444 = vpop.f32.mrb[0].mxu0
    %v445 = vadd.f32 0.0, %v444
    %v446 = vpop.f32.mrb[0].mxu0
    %447 = vdwg.mxu0
    %v449 = vrot.slane %v445, 6
    %v451 = vadd.f32 %v158, %v449
    %v452 = vxor.u32 %v451, 2147483648
    %v453 = vmul.f32 %v452, 1.442695
    %v454 = vpow.pop %v453
    %v455 = vadd.f32 %v454, 1.0
    %v456 = vrcp.pop %v455
    %v457 = vmul.f32 1.0, %v456
    %v458 = vmul.f32 %v457, 2.0
    %v459 = vsub.f32 %v458, 1.0
    %v461 = vrot.slane %v365, 7
    %v463 = vmul.f32 %v457, %v461
    %465 = vrot.lane.b32.xlu0 %v459, 64
    %v466 = vpop.permute.xlu0 %465
    %v468 = vmul.f32 %v457, %v466
    %470 = vrot.lane.b32.xlu0 %v468, 32
    %v471 = vpop.permute.xlu0 %470
    %v473 = vadd.f32 %v463, %v471
    %v474 = vtanh.pop %v473
    %476 = vrot.lane.b32.xlu0 %v474, 64
    %v477 = vpop.permute.xlu0 %476
    %v479 = vmul.f32 %v457, %v477
    %v481 = vrot.slane %v479, 2
    %482 = vrot.lane.b32.xlu0 %v481, 32
    %v483 = vpop.permute.xlu0 %482
    %v484 = vsel %vm165, %v483, 0
    %486 = vmatprep.subr.mxu0 0.0
    %487 = vmatpush1.msra.mxu0 %v161
    %488 = vmatprep.subr.mxu0 0.0
    %489 = vmatpush1.msra.mxu0 %v162
    %490 = vmatprep.subr.mxu0 0.0
    %491 = vmatpush1.msra.mxu0 %v163
    %492 = vmatprep.subr.mxu0 0.0
    %493 = vmatpush1.msra.mxu0 %v164
    %494 = vmatprep.subr.mxu0 0.0
    %495 = vmatpush1.msra.mxu0 0.0
    %496 = vmatprep.subr.mxu0 0.0
    %497 = vmatpush1.msra.mxu0 0.0
    %498 = vmatprep.subr.mxu0 0.0
    %499 = vmatpush1.msra.mxu0 0.0
    %500 = vmatprep.subr.mxu0 0.0
    %501 = vmatpush1.msra.mxu0 0.0
    %502 = vmatprep.subr.mxu0 0.0
    %503 = vmatpush1.msra.mxu0 0.0
    %504 = vmatprep.subr.mxu0 0.0
    %505 = vmatpush1.msra.mxu0 0.0
    %506 = vmatprep.subr.mxu0 0.0
    %507 = vmatpush1.msra.mxu0 0.0
    %508 = vmatprep.subr.mxu0 0.0
    %509 = vmatpush1.msra.mxu0 0.0
    %510 = vmatprep.subr.mxu0 0.0
    %511 = vmatpush1.msra.mxu0 0.0
    %512 = vmatprep.subr.mxu0 0.0
    %513 = vmatpush1.msra.mxu0 0.0
    %514 = vmatprep.subr.mxu0 0.0
    %515 = vmatpush1.msra.mxu0 0.0
    %516 = vmatprep.subr.mxu0 0.0
    %517 = vmatpush1.msra.mxu0 0.0
    %518 = vmatprep.subr.mxu0 0.0
    %519 = vmatpush1.msra.mxu0 0.0
    %520 = vmatprep.subr.mxu0 0.0
    %521 = vmatpush1.msra.mxu0 0.0
    %522 = vmatprep.subr.mxu0 0.0
    %523 = vmatpush1.msra.mxu0 0.0
    %524 = vmatprep.subr.mxu0 0.0
    %525 = vmatpush1.msra.mxu0 0.0
    %526 = vmatprep.subr.mxu0 0.0
    %527 = vmatpush1.msra.mxu0 0.0
    %528 = vmatprep.subr.mxu0 0.0
    %529 = vmatpush1.msra.mxu0 0.0
    %530 = vmatprep.subr.mxu0 0.0
    %531 = vmatpush1.msra.mxu0 0.0
    %532 = vmatprep.subr.mxu0 0.0
    %533 = vmatpush1.msra.mxu0 0.0
    %534 = vmatprep.subr.mxu0 0.0
    %535 = vmatpush1.msra.mxu0 0.0
    %536 = vmatprep.subr.mxu0 0.0
    %537 = vmatpush1.msra.mxu0 0.0
    %538 = vmatprep.subr.mxu0 0.0
    %539 = vmatpush1.msra.mxu0 0.0
    %540 = vmatprep.subr.mxu0 0.0
    %541 = vmatpush1.msra.mxu0 0.0
    %542 = vmatprep.subr.mxu0 0.0
    %543 = vmatpush1.msra.mxu0 0.0
    %544 = vmatprep.subr.mxu0 0.0
    %545 = vmatpush1.msra.mxu0 0.0
    %546 = vmatprep.subr.mxu0 0.0
    %547 = vmatpush1.msra.mxu0 0.0
    %548 = vmatprep.subr.mxu0 0.0
    %549 = vmatpush1.msra.mxu0 0.0
    %550 = vmatprep.mubr.f32.mxu0 0.0
    %551 = vmatmul.mubr.f32.gmra.mrb[0].mxu0 %v484
    %v552 = vpop.f32.mrb[0].mxu0
    %v553 = vadd.f32 0.0, %v552
    %v554 = vpop.f32.mrb[0].mxu0
    %555 = vdwg.mxu0
    %v557 = vrot.slane %v553, 5
    %v559 = vadd.f32 %v158, %v557
    %v560 = vxor.u32 %v559, 2147483648
    %v561 = vmul.f32 %v560, 1.442695
    %v562 = vpow.pop %v561
    %v563 = vadd.f32 %v562, 1.0
    %v564 = vrcp.pop %v563
    %v565 = vmul.f32 1.0, %v564
    %v566 = vmul.f32 %v565, 2.0
    %v567 = vsub.f32 %v566, 1.0
    %v569 = vrot.slane %v473, 7
    %v571 = vmul.f32 %v565, %v569
    %573 = vrot.lane.b32.xlu0 %v567, 64
    %v574 = vpop.permute.xlu0 %573
    %v576 = vmul.f32 %v565, %v574
    %578 = vrot.lane.b32.xlu0 %v576, 32
    %v579 = vpop.permute.xlu0 %578
    %v581 = vadd.f32 %v571, %v579
    %v582 = vtanh.pop %v581
    %584 = vrot.lane.b32.xlu0 %v582, 64
    %v585 = vpop.permute.xlu0 %584
    %v587 = vmul.f32 %v565, %v585
    %v589 = vrot.slane %v587, 3
    %590 = vrot.lane.b32.xlu0 %v589, 32
    %v591 = vpop.permute.xlu0 %590
    %v592 = vsel %vm165, %v591, 0
    %594 = vmatprep.subr.mxu0 0.0
    %595 = vmatpush1.msra.mxu0 %v161
    %596 = vmatprep.subr.mxu0 0.0
    %597 = vmatpush1.msra.mxu0 %v162
    %598 = vmatprep.subr.mxu0 0.0
    %599 = vmatpush1.msra.mxu0 %v163
    %600 = vmatprep.subr.mxu0 0.0
    %601 = vmatpush1.msra.mxu0 %v164
    %602 = vmatprep.subr.mxu0 0.0
    %603 = vmatpush1.msra.mxu0 0.0
    %604 = vmatprep.subr.mxu0 0.0
    %605 = vmatpush1.msra.mxu0 0.0
    %606 = vmatprep.subr.mxu0 0.0
    %607 = vmatpush1.msra.mxu0 0.0
    %608 = vmatprep.subr.mxu0 0.0
    %609 = vmatpush1.msra.mxu0 0.0
    %610 = vmatprep.subr.mxu0 0.0
    %611 = vmatpush1.msra.mxu0 0.0
    %612 = vmatprep.subr.mxu0 0.0
    %613 = vmatpush1.msra.mxu0 0.0
    %614 = vmatprep.subr.mxu0 0.0
    %615 = vmatpush1.msra.mxu0 0.0
    %616 = vmatprep.subr.mxu0 0.0
    %617 = vmatpush1.msra.mxu0 0.0
    %618 = vmatprep.subr.mxu0 0.0
    %619 = vmatpush1.msra.mxu0 0.0
    %620 = vmatprep.subr.mxu0 0.0
    %621 = vmatpush1.msra.mxu0 0.0
    %622 = vmatprep.subr.mxu0 0.0
    %623 = vmatpush1.msra.mxu0 0.0
    %624 = vmatprep.subr.mxu0 0.0
    %625 = vmatpush1.msra.mxu0 0.0
    %626 = vmatprep.subr.mxu0 0.0
    %627 = vmatpush1.msra.mxu0 0.0
    %628 = vmatprep.subr.mxu0 0.0
    %629 = vmatpush1.msra.mxu0 0.0
    %630 = vmatprep.subr.mxu0 0.0
    %631 = vmatpush1.msra.mxu0 0.0
    %632 = vmatprep.subr.mxu0 0.0
    %633 = vmatpush1.msra.mxu0 0.0
    %634 = vmatprep.subr.mxu0 0.0
    %635 = vmatpush1.msra.mxu0 0.0
    %636 = vmatprep.subr.mxu0 0.0
    %637 = vmatpush1.msra.mxu0 0.0
    %638 = vmatprep.subr.mxu0 0.0
    %639 = vmatpush1.msra.mxu0 0.0
    %640 = vmatprep.subr.mxu0 0.0
    %641 = vmatpush1.msra.mxu0 0.0
    %642 = vmatprep.subr.mxu0 0.0
    %643 = vmatpush1.msra.mxu0 0.0
    %644 = vmatprep.subr.mxu0 0.0
    %645 = vmatpush1.msra.mxu0 0.0
    %646 = vmatprep.subr.mxu0 0.0
    %647 = vmatpush1.msra.mxu0 0.0
    %648 = vmatprep.subr.mxu0 0.0
    %649 = vmatpush1.msra.mxu0 0.0
    %650 = vmatprep.subr.mxu0 0.0
    %651 = vmatpush1.msra.mxu0 0.0
    %652 = vmatprep.subr.mxu0 0.0
    %653 = vmatpush1.msra.mxu0 0.0
    %654 = vmatprep.subr.mxu0 0.0
    %655 = vmatpush1.msra.mxu0 0.0
    %656 = vmatprep.subr.mxu0 0.0
    %657 = vmatpush1.msra.mxu0 0.0
    %658 = vmatprep.mubr.f32.mxu0 0.0
    %659 = vmatmul.mubr.f32.gmra.mrb[0].mxu0 %v592
    %v660 = vpop.f32.mrb[0].mxu0
    %v661 = vadd.f32 0.0, %v660
    %v662 = vpop.f32.mrb[0].mxu0
    %663 = vdwg.mxu0
    %v665 = vrot.slane %v661, 4
    %v667 = vadd.f32 %v158, %v665
    %v668 = vxor.u32 %v667, 2147483648
    %v669 = vmul.f32 %v668, 1.442695
    %v670 = vpow.pop %v669
    %v671 = vadd.f32 %v670, 1.0
    %v672 = vrcp.pop %v671
    %v673 = vmul.f32 1.0, %v672
    %v674 = vmul.f32 %v673, 2.0
    %v675 = vsub.f32 %v674, 1.0
    %v677 = vrot.slane %v581, 7
    %v679 = vmul.f32 %v673, %v677
    %681 = vrot.lane.b32.xlu0 %v675, 64
    %v682 = vpop.permute.xlu0 %681
    %v684 = vmul.f32 %v673, %v682
    %686 = vrot.lane.b32.xlu0 %v684, 32
    %v687 = vpop.permute.xlu0 %686
    %v689 = vadd.f32 %v679, %v687
    %v690 = vtanh.pop %v689
    %692 = vrot.lane.b32.xlu0 %v690, 64
    %v693 = vpop.permute.xlu0 %692
    %v695 = vmul.f32 %v673, %v693
    %v697 = vrot.slane %v695, 4
    %698 = vrot.lane.b32.xlu0 %v697, 32
    %v699 = vpop.permute.xlu0 %698
    %v700 = vsel %vm165, %v699, 0
    %702 = vmatprep.subr.mxu0 0.0
    %703 = vmatpush1.msra.mxu0 %v161
    %704 = vmatprep.subr.mxu0 0.0
    %705 = vmatpush1.msra.mxu0 %v162
    %706 = vmatprep.subr.mxu0 0.0
    %707 = vmatpush1.msra.mxu0 %v163
    %708 = vmatprep.subr.mxu0 0.0
    %709 = vmatpush1.msra.mxu0 %v164
    %710 = vmatprep.subr.mxu0 0.0
    %711 = vmatpush1.msra.mxu0 0.0
    %712 = vmatprep.subr.mxu0 0.0
    %713 = vmatpush1.msra.mxu0 0.0
    %714 = vmatprep.subr.mxu0 0.0
    %715 = vmatpush1.msra.mxu0 0.0
    %716 = vmatprep.subr.mxu0 0.0
    %717 = vmatpush1.msra.mxu0 0.0
    %718 = vmatprep.subr.mxu0 0.0
    %719 = vmatpush1.msra.mxu0 0.0
    %720 = vmatprep.subr.mxu0 0.0
    %721 = vmatpush1.msra.mxu0 0.0
    %722 = vmatprep.subr.mxu0 0.0
    %723 = vmatpush1.msra.mxu0 0.0
    %724 = vmatprep.subr.mxu0 0.0
    %725 = vmatpush1.msra.mxu0 0.0
    %726 = vmatprep.subr.mxu0 0.0
    %727 = vmatpush1.msra.mxu0 0.0
    %728 = vmatprep.subr.mxu0 0.0
    %729 = vmatpush1.msra.mxu0 0.0
    %730 = vmatprep.subr.mxu0 0.0
    %731 = vmatpush1.msra.mxu0 0.0
    %732 = vmatprep.subr.mxu0 0.0
    %733 = vmatpush1.msra.mxu0 0.0
    %734 = vmatprep.subr.mxu0 0.0
    %735 = vmatpush1.msra.mxu0 0.0
    %736 = vmatprep.subr.mxu0 0.0
    %737 = vmatpush1.msra.mxu0 0.0
    %738 = vmatprep.subr.mxu0 0.0
    %739 = vmatpush1.msra.mxu0 0.0
    %740 = vmatprep.subr.mxu0 0.0
    %741 = vmatpush1.msra.mxu0 0.0
    %742 = vmatprep.subr.mxu0 0.0
    %743 = vmatpush1.msra.mxu0 0.0
    %744 = vmatprep.subr.mxu0 0.0
    %745 = vmatpush1.msra.mxu0 0.0
    %746 = vmatprep.subr.mxu0 0.0
    %747 = vmatpush1.msra.mxu0 0.0
    %748 = vmatprep.subr.mxu0 0.0
    %749 = vmatpush1.msra.mxu0 0.0
    %750 = vmatprep.subr.mxu0 0.0
    %751 = vmatpush1.msra.mxu0 0.0
    %752 = vmatprep.subr.mxu0 0.0
    %753 = vmatpush1.msra.mxu0 0.0
    %754 = vmatprep.subr.mxu0 0.0
    %755 = vmatpush1.msra.mxu0 0.0
    %756 = vmatprep.subr.mxu0 0.0
    %757 = vmatpush1.msra.mxu0 0.0
    %758 = vmatprep.subr.mxu0 0.0
    %759 = vmatpush1.msra.mxu0 0.0
    %760 = vmatprep.subr.mxu0 0.0
    %761 = vmatpush1.msra.mxu0 0.0
    %762 = vmatprep.subr.mxu0 0.0
    %763 = vmatpush1.msra.mxu0 0.0
    %764 = vmatprep.subr.mxu0 0.0
    %765 = vmatpush1.msra.mxu0 0.0
    %766 = vmatprep.mubr.f32.mxu0 0.0
    %767 = vmatmul.mubr.f32.gmra.mrb[0].mxu0 %v700
    %v768 = vpop.f32.mrb[0].mxu0
    %v769 = vadd.f32 0.0, %v768
    %v770 = vpop.f32.mrb[0].mxu0
    %771 = vdwg.mxu0
    %v773 = vrot.slane %v769, 3
    %v775 = vadd.f32 %v158, %v773
    %v776 = vxor.u32 %v775, 2147483648
    %v777 = vmul.f32 %v776, 1.442695
    %v778 = vpow.pop %v777
    %v779 = vadd.f32 %v778, 1.0
    %v780 = vrcp.pop %v779
    %v781 = vmul.f32 1.0, %v780
    %v782 = vmul.f32 %v781, 2.0
    %v783 = vsub.f32 %v782, 1.0
    %v785 = vrot.slane %v689, 7
    %v787 = vmul.f32 %v781, %v785
    %789 = vrot.lane.b32.xlu0 %v783, 64
    %v790 = vpop.permute.xlu0 %789
    %v792 = vmul.f32 %v781, %v790
    %794 = vrot.lane.b32.xlu0 %v792, 32
    %v795 = vpop.permute.xlu0 %794
    %v797 = vadd.f32 %v787, %v795
    %v798 = vtanh.pop %v797
    %800 = vrot.lane.b32.xlu0 %v798, 64
    %v801 = vpop.permute.xlu0 %800
    %v803 = vmul.f32 %v781, %v801
    %v805 = vrot.slane %v803, 5
    %806 = vrot.lane.b32.xlu0 %v805, 32
    %v807 = vpop.permute.xlu0 %806
    %v808 = vsel %vm165, %v807, 0
    %810 = vmatprep.subr.mxu0 0.0
    %811 = vmatpush1.msra.mxu0 %v161
    %812 = vmatprep.subr.mxu0 0.0
    %813 = vmatpush1.msra.mxu0 %v162
    %814 = vmatprep.subr.mxu0 0.0
    %815 = vmatpush1.msra.mxu0 %v163
    %816 = vmatprep.subr.mxu0 0.0
    %817 = vmatpush1.msra.mxu0 %v164
    %818 = vmatprep.subr.mxu0 0.0
    %819 = vmatpush1.msra.mxu0 0.0
    %820 = vmatprep.subr.mxu0 0.0
    %821 = vmatpush1.msra.mxu0 0.0
    %822 = vmatprep.subr.mxu0 0.0
    %823 = vmatpush1.msra.mxu0 0.0
    %824 = vmatprep.subr.mxu0 0.0
    %825 = vmatpush1.msra.mxu0 0.0
    %826 = vmatprep.subr.mxu0 0.0
    %827 = vmatpush1.msra.mxu0 0.0
    %828 = vmatprep.subr.mxu0 0.0
    %829 = vmatpush1.msra.mxu0 0.0
    %830 = vmatprep.subr.mxu0 0.0
    %831 = vmatpush1.msra.mxu0 0.0
    %832 = vmatprep.subr.mxu0 0.0
    %833 = vmatpush1.msra.mxu0 0.0
    %834 = vmatprep.subr.mxu0 0.0
    %835 = vmatpush1.msra.mxu0 0.0
    %836 = vmatprep.subr.mxu0 0.0
    %837 = vmatpush1.msra.mxu0 0.0
    %838 = vmatprep.subr.mxu0 0.0
    %839 = vmatpush1.msra.mxu0 0.0
    %840 = vmatprep.subr.mxu0 0.0
    %841 = vmatpush1.msra.mxu0 0.0
    %842 = vmatprep.subr.mxu0 0.0
    %843 = vmatpush1.msra.mxu0 0.0
    %844 = vmatprep.subr.mxu0 0.0
    %845 = vmatpush1.msra.mxu0 0.0
    %846 = vmatprep.subr.mxu0 0.0
    %847 = vmatpush1.msra.mxu0 0.0
    %848 = vmatprep.subr.mxu0 0.0
    %849 = vmatpush1.msra.mxu0 0.0
    %850 = vmatprep.subr.mxu0 0.0
    %851 = vmatpush1.msra.mxu0 0.0
    %852 = vmatprep.subr.mxu0 0.0
    %853 = vmatpush1.msra.mxu0 0.0
    %854 = vmatprep.subr.mxu0 0.0
    %855 = vmatpush1.msra.mxu0 0.0
    %856 = vmatprep.subr.mxu0 0.0
    %857 = vmatpush1.msra.mxu0 0.0
    %858 = vmatprep.subr.mxu0 0.0
    %859 = vmatpush1.msra.mxu0 0.0
    %860 = vmatprep.subr.mxu0 0.0
    %861 = vmatpush1.msra.mxu0 0.0
    %862 = vmatprep.subr.mxu0 0.0
    %863 = vmatpush1.msra.mxu0 0.0
    %864 = vmatprep.subr.mxu0 0.0
    %865 = vmatpush1.msra.mxu0 0.0
    %866 = vmatprep.subr.mxu0 0.0
    %867 = vmatpush1.msra.mxu0 0.0
    %868 = vmatprep.subr.mxu0 0.0
    %869 = vmatpush1.msra.mxu0 0.0
    %870 = vmatprep.subr.mxu0 0.0
    %871 = vmatpush1.msra.mxu0 0.0
    %872 = vmatprep.subr.mxu0 0.0
    %873 = vmatpush1.msra.mxu0 0.0
    %874 = vmatprep.mubr.f32.mxu0 0.0
    %875 = vmatmul.mubr.f32.gmra.mrb[0].mxu0 %v808
    %v876 = vpop.f32.mrb[0].mxu0
    %v877 = vadd.f32 0.0, %v876
    %v878 = vpop.f32.mrb[0].mxu0
    %879 = vdwg.mxu0
    %v881 = vrot.slane %v877, 2
    %v883 = vadd.f32 %v158, %v881
    %v884 = vxor.u32 %v883, 2147483648
    %v885 = vmul.f32 %v884, 1.442695
    %v886 = vpow.pop %v885
    %v887 = vadd.f32 %v886, 1.0
    %v888 = vrcp.pop %v887
    %v889 = vmul.f32 1.0, %v888
    %v890 = vmul.f32 %v889, 2.0
    %v891 = vsub.f32 %v890, 1.0
    %v893 = vrot.slane %v797, 7
    %v895 = vmul.f32 %v889, %v893
    %897 = vrot.lane.b32.xlu0 %v891, 64
    %v898 = vpop.permute.xlu0 %897
    %v900 = vmul.f32 %v889, %v898
    %902 = vrot.lane.b32.xlu0 %v900, 32
    %v903 = vpop.permute.xlu0 %902
    %v905 = vadd.f32 %v895, %v903
    %v906 = vtanh.pop %v905
    %908 = vrot.lane.b32.xlu0 %v906, 64
    %v909 = vpop.permute.xlu0 %908
    %v911 = vmul.f32 %v889, %v909
    %v913 = vrot.slane %v911, 6
    %914 = vrot.lane.b32.xlu0 %v913, 32
    %v915 = vpop.permute.xlu0 %914
    %v916 = vsel %vm165, %v915, 0
    %918 = vmatprep.subr.mxu0 0.0
    %919 = vmatpush1.msra.mxu0 %v161
    %920 = vmatprep.subr.mxu0 0.0
    %921 = vmatpush1.msra.mxu0 %v162
    %922 = vmatprep.subr.mxu0 0.0
    %923 = vmatpush1.msra.mxu0 %v163
    %924 = vmatprep.subr.mxu0 0.0
    %925 = vmatpush1.msra.mxu0 %v164
    %926 = vmatprep.subr.mxu0 0.0
    %927 = vmatpush1.msra.mxu0 0.0
    %928 = vmatprep.subr.mxu0 0.0
    %929 = vmatpush1.msra.mxu0 0.0
    %930 = vmatprep.subr.mxu0 0.0
    %931 = vmatpush1.msra.mxu0 0.0
    %932 = vmatprep.subr.mxu0 0.0
    %933 = vmatpush1.msra.mxu0 0.0
    %934 = vmatprep.subr.mxu0 0.0
    %935 = vmatpush1.msra.mxu0 0.0
    %936 = vmatprep.subr.mxu0 0.0
    %937 = vmatpush1.msra.mxu0 0.0
    %938 = vmatprep.subr.mxu0 0.0
    %939 = vmatpush1.msra.mxu0 0.0
    %940 = vmatprep.subr.mxu0 0.0
    %941 = vmatpush1.msra.mxu0 0.0
    %942 = vmatprep.subr.mxu0 0.0
    %943 = vmatpush1.msra.mxu0 0.0
    %944 = vmatprep.subr.mxu0 0.0
    %945 = vmatpush1.msra.mxu0 0.0
    %946 = vmatprep.subr.mxu0 0.0
    %947 = vmatpush1.msra.mxu0 0.0
    %948 = vmatprep.subr.mxu0 0.0
    %949 = vmatpush1.msra.mxu0 0.0
    %950 = vmatprep.subr.mxu0 0.0
    %951 = vmatpush1.msra.mxu0 0.0
    %952 = vmatprep.subr.mxu0 0.0
    %953 = vmatpush1.msra.mxu0 0.0
    %954 = vmatprep.subr.mxu0 0.0
    %955 = vmatpush1.msra.mxu0 0.0
    %956 = vmatprep.subr.mxu0 0.0
    %957 = vmatpush1.msra.mxu0 0.0
    %958 = vmatprep.subr.mxu0 0.0
    %959 = vmatpush1.msra.mxu0 0.0
    %960 = vmatprep.subr.mxu0 0.0
    %961 = vmatpush1.msra.mxu0 0.0
    %962 = vmatprep.subr.mxu0 0.0
    %963 = vmatpush1.msra.mxu0 0.0
    %964 = vmatprep.subr.mxu0 0.0
    %965 = vmatpush1.msra.mxu0 0.0
    %966 = vmatprep.subr.mxu0 0.0
    %967 = vmatpush1.msra.mxu0 0.0
    %968 = vmatprep.subr.mxu0 0.0
    %969 = vmatpush1.msra.mxu0 0.0
    %970 = vmatprep.subr.mxu0 0.0
    %971 = vmatpush1.msra.mxu0 0.0
    %972 = vmatprep.subr.mxu0 0.0
    %973 = vmatpush1.msra.mxu0 0.0
    %974 = vmatprep.subr.mxu0 0.0
    %975 = vmatpush1.msra.mxu0 0.0
    %976 = vmatprep.subr.mxu0 0.0
    %977 = vmatpush1.msra.mxu0 0.0
    %978 = vmatprep.subr.mxu0 0.0
    %979 = vmatpush1.msra.mxu0 0.0
    %980 = vmatprep.subr.mxu0 0.0
    %981 = vmatpush1.msra.mxu0 0.0
    %982 = vmatprep.mubr.f32.mxu0 0.0
    %983 = vmatmul.mubr.f32.gmra.mrb[0].mxu0 %v916
    %v984 = vpop.f32.mrb[0].mxu0
    %v985 = vadd.f32 0.0, %v984
    %v986 = vpop.f32.mrb[0].mxu0
    %987 = vdwg.mxu0
    %v989 = vrot.slane %v985, 1
    %v991 = vadd.f32 %v158, %v989
    %v992 = vxor.u32 %v991, 2147483648
    %v993 = vmul.f32 %v992, 1.442695
    %v994 = vpow.pop %v993
    %v995 = vadd.f32 %v994, 1.0
    %v996 = vrcp.pop %v995
    %v997 = vmul.f32 1.0, %v996
    %v998 = vmul.f32 %v997, 2.0
    %v999 = vsub.f32 %v998, 1.0
    %v1001 = vrot.slane %v905, 7
    %v1003 = vmul.f32 %v997, %v1001
    %1005 = vrot.lane.b32.xlu0 %v999, 64
    %v1006 = vpop.permute.xlu0 %1005
    %v1008 = vmul.f32 %v997, %v1006
    %1010 = vrot.lane.b32.xlu0 %v1008, 32
    %v1011 = vpop.permute.xlu0 %1010
    %v1013 = vadd.f32 %v1003, %v1011
    %v1014 = vtanh.pop %v1013
    %1016 = vrot.lane.b32.xlu0 %v1014, 64
    %v1017 = vpop.permute.xlu0 %1016
    %v1019 = vmul.f32 %v997, %v1017
    %v1020 = vld [vmem:[#allocation8] sm:$0xff]
    %v1021 = vld [vmem:[#allocation8 + $0x8] sm:$0xff]
    %v1022 = vld [vmem:[#allocation8 + $0x10] sm:$0xff]
    %v1023 = vld [vmem:[#allocation8 + $0x18] sm:$0xff]
    %v1024 = vld [vmem:[%s5] sm:$0x1]
    %v1026 = vrot.slane %v1019, 7
    %1027 = vrot.lane.b32.xlu0 %v1026, 32
    %v1028 = vpop.permute.xlu0 %1027
    %v1029 = vsel %vm165, %v1028, 0
    %1031 = vmatprep.subr.mxu0 0.0
    %1032 = vmatpush1.msra.mxu0 %v1020
    %1033 = vmatprep.subr.mxu0 0.0
    %1034 = vmatpush1.msra.mxu0 %v1021
    %1035 = vmatprep.subr.mxu0 0.0
    %1036 = vmatpush1.msra.mxu0 %v1022
    %1037 = vmatprep.subr.mxu0 0.0
    %1038 = vmatpush1.msra.mxu0 %v1023
    %1039 = vmatprep.subr.mxu0 0.0
    %1040 = vmatpush1.msra.mxu0 0.0
    %1041 = vmatprep.subr.mxu0 0.0
    %1042 = vmatpush1.msra.mxu0 0.0
    %1043 = vmatprep.subr.mxu0 0.0
    %1044 = vmatpush1.msra.mxu0 0.0
    %1045 = vmatprep.subr.mxu0 0.0
    %1046 = vmatpush1.msra.mxu0 0.0
    %1047 = vmatprep.subr.mxu0 0.0
    %1048 = vmatpush1.msra.mxu0 0.0
    %1049 = vmatprep.subr.mxu0 0.0
    %1050 = vmatpush1.msra.mxu0 0.0
    %1051 = vmatprep.subr.mxu0 0.0
    %1052 = vmatpush1.msra.mxu0 0.0
    %1053 = vmatprep.subr.mxu0 0.0
    %1054 = vmatpush1.msra.mxu0 0.0
    %1055 = vmatprep.subr.mxu0 0.0
    %1056 = vmatpush1.msra.mxu0 0.0
    %1057 = vmatprep.subr.mxu0 0.0
    %1058 = vmatpush1.msra.mxu0 0.0
    %1059 = vmatprep.subr.mxu0 0.0
    %1060 = vmatpush1.msra.mxu0 0.0
    %1061 = vmatprep.subr.mxu0 0.0
    %1062 = vmatpush1.msra.mxu0 0.0
    %1063 = vmatprep.subr.mxu0 0.0
    %1064 = vmatpush1.msra.mxu0 0.0
    %1065 = vmatprep.subr.mxu0 0.0
    %1066 = vmatpush1.msra.mxu0 0.0
    %1067 = vmatprep.subr.mxu0 0.0
    %1068 = vmatpush1.msra.mxu0 0.0
    %1069 = vmatprep.subr.mxu0 0.0
    %1070 = vmatpush1.msra.mxu0 0.0
    %1071 = vmatprep.subr.mxu0 0.0
    %1072 = vmatpush1.msra.mxu0 0.0
    %1073 = vmatprep.subr.mxu0 0.0
    %1074 = vmatpush1.msra.mxu0 0.0
    %1075 = vmatprep.subr.mxu0 0.0
    %1076 = vmatpush1.msra.mxu0 0.0
    %1077 = vmatprep.subr.mxu0 0.0
    %1078 = vmatpush1.msra.mxu0 0.0
    %1079 = vmatprep.subr.mxu0 0.0
    %1080 = vmatpush1.msra.mxu0 0.0
    %1081 = vmatprep.subr.mxu0 0.0
    %1082 = vmatpush1.msra.mxu0 0.0
    %1083 = vmatprep.subr.mxu0 0.0
    %1084 = vmatpush1.msra.mxu0 0.0
    %1085 = vmatprep.subr.mxu0 0.0
    %1086 = vmatpush1.msra.mxu0 0.0
    %1087 = vmatprep.subr.mxu0 0.0
    %1088 = vmatpush1.msra.mxu0 0.0
    %1089 = vmatprep.subr.mxu0 0.0
    %1090 = vmatpush1.msra.mxu0 0.0
    %1091 = vmatprep.subr.mxu0 0.0
    %1092 = vmatpush1.msra.mxu0 0.0
    %1093 = vmatprep.subr.mxu0 0.0
    %1094 = vmatpush1.msra.mxu0 0.0
    %1095 = vmatprep.mubr.f32.mxu0 0.0
    %1096 = vmatmul.mubr.f32.gmra.mrb[0].mxu0 %v1029
    %v1097 = vpop.f32.mrb[0].mxu0
    %v1098 = vadd.f32 %v1024, %v1097
    %v1099 = vpop.f32.mrb[0].mxu0
    %1100 = vdwg.mxu0
    %vm1101 = vcmask 1040384
    %v1102 = vsel %vm1101, %v1098, -inf
    %1103 = vmax.xlane.f32.xlu0 %v1102
    %v1104 = vpop.xlane.xlu0 %1103
    %v1105 = vsub.f32 %v1098, %v1104
    %v1106 = vmul.f32 %v1105, 1.442695
    %v1107 = vpow.pop %v1106
    %v1108 = vsel %vm1101, %v1107, 0.0
    %1109 = vadd.xlane.f32.xlu0 %v1108
    %v1110 = vpop.xlane.xlu0 %1109
    %v1111 = vrcp.pop %v1110
    %v1112 = vmul.f32 %v1107, %v1111
    %1113 = vst [vmem:[#allocation10] sm:$0x1] %v1112
    // Predicated region
    $region42: #{tpu_custom_call.1} parent=1 // pred_check
      _
    $region43: #{tpu_custom_call.1} parent=1 // pred_check_branch
      %1115 = sbr.rel (0) target = $region45
    $region44: #{tpu_custom_call.1} parent=1 // pred_region
      %s1117 = ssub.s32 16, 16
      %1118 = vsyncadd [#allocation4], %s1117
      %s1120 = sshll.u32 [#allocation10], 4
      %s1121 = int_to_ptr.vmem [resolvable:$true] %s1120
      %1123 = dma.vmem_to_hbm [thread:$0]  %s1121, 16, %s6, [#allocation4]
    $region45: #{tpu_custom_call.1} parent=1 // pred_fallthru
      _
    // Predicated region
    $region46: #{tpu_custom_call.1} parent=1 // pred_check
      _
    $region47: #{tpu_custom_call.1} parent=1 // pred_check_branch
      %1125 = sbr.rel (0) target = $region49
    $region48: #{tpu_custom_call.1} parent=1 // pred_region
      %1126 = dma.done [#allocation4], 16
    $region49: #{tpu_custom_call.1} parent=1 // pred_fallthru
      _
    %1127 = vsyncpa [#allocation3], 1
    %1128 = vsyncpa [#allocation6], 1
    %1129 = vsyncpa [#allocation9], 1
    %1130 = vsyncpa [#allocation4], 1

</llo_original>
